<compile_context>
chip_gen: v7x
topology: tpu7x:2x2x1
jax: 0.10.0
libtpu: 0.0.40
codegen_flags: <defaults>
</compile_context>

<pallas_src>
import functools

import jax
import jax.numpy as jnp
import numpy as np
from jax.experimental import pallas as pl
from jax.experimental.pallas import tpu as pltpu


# ----------------------------- schedules (glue) -----------------------------
def ddpm_schedules(beta1, beta2, T):
    assert beta1 < beta2 < 1.0, "beta1 and beta2 must be in (0, 1)"
    beta_t = (beta2 - beta1) * jnp.arange(0, T + 1, dtype=jnp.float32) / T + beta1
    sqrt_beta_t = jnp.sqrt(beta_t)
    alpha_t = 1.0 - beta_t
    log_alpha_t = jnp.log(alpha_t)
    alphabar_t = jnp.exp(jnp.cumsum(log_alpha_t))
    sqrtab = jnp.sqrt(alphabar_t)
    oneover_sqrta = 1.0 / jnp.sqrt(alpha_t)
    sqrtmab = jnp.sqrt(1.0 - alphabar_t)
    mab_over_sqrtmab_inv = (1.0 - alpha_t) / sqrtmab
    return {
        "alpha_t": alpha_t,
        "oneover_sqrta": oneover_sqrta,
        "sqrt_beta_t": sqrt_beta_t,
        "alphabar_t": alphabar_t,
        "sqrtab": sqrtab,
        "sqrtmab": sqrtmab,
        "mab_over_sqrtmab": mab_over_sqrtmab_inv,
    }


# ------------------------------- Pallas kernel -------------------------------
def ddpm_loss_kernel(slab_ref,   # VMEM (2*CB, HW) f32: rows [0,CB)=x, [CB,2CB)=noise, row = c*B + b
                     scl_ref,    # VMEM (CB, 3+C) f32: col0 sqrtab[t_b], col1 sqrtmab[t_b],
                                 #   col2 b[o]+tw[o]*t/n_T  (row = o*B + b), col 3+c = w[o, c]
                     loss_ref,   # VMEM (1, 1) f32 output
                     *, B, C, inv_total):
    CB = B * C

    # one full-width load for each half of the stacked slab (single input DMA)
    x = slab_ref[0:CB, :]             # (CB, HW) f32
    noise = slab_ref[CB:2 * CB, :]    # (CB, HW) f32

    # forward-diffusion mix: sublane-full f32 VPU FMAs
    x_t = scl_ref[:, 0:1] * x + scl_ref[:, 1:2] * noise        # (CB, HW)

    # Surrogate eps-model: statically-unrolled VPU broadcast-FMAs per
    # output-channel block (replaces the old block-diag MXU dot + its DMA):
    #   eps[o*B + b] = bias[o, b] + sum_c w[o, c] * x_t[c*B + b]
    total = jnp.zeros((1, 1), jnp.float32)
    for o in range(C):
        r0, r1 = o * B, (o + 1) * B
        acc = scl_ref[r0:r1, 2:3]                               # (B, 1) time-conditioned bias
        for c in range(C):
            acc = acc + scl_ref[r0:r1, 3 + c:4 + c] * x_t[c * B:(c + 1) * B, :]
        d = noise[r0:r1, :] - acc                               # (B, HW)
        sq = jnp.sum(d * d, axis=1, keepdims=True)              # (B, 1) lane reduce
        total = total + jnp.sum(sq, axis=0, keepdims=True)      # (1, 1) sublane reduce

    loss_ref[...] = total * inv_total


# --------------------------------- wrapper ------------------------------------
@functools.partial(jax.jit, static_argnames=("n_T",))
def ddpm_forward(x_nchw, key, schedules, n_T, w, b_vec, tw):
    B, C, H, W = x_nchw.shape
    HW = H * W
    CB = B * C

    k_ts, k_noise = jax.random.split(key)
    ts = jax.random.randint(k_ts, (B,), 1, n_T + 1)                       # torch.randint(1, n_T+1)
    noise = jax.random.normal(k_noise, x_nchw.shape, dtype=jnp.float32)   # randn_like(x)
    t_norm = ts.astype(jnp.float32) / n_T                                 # (B,)

    # (channel, batch)-major rows, flattened spatial; single stacked slab -> 1 DMA
    x_rows = jnp.transpose(x_nchw, (1, 0, 2, 3)).reshape(CB, HW).astype(jnp.float32)
    n_rows = jnp.transpose(noise, (1, 0, 2, 3)).reshape(CB, HW)
    slab = jnp.concatenate([x_rows, n_rows], axis=0)                      # (2*CB, HW) f32

    # one packed per-row scale/weight table -> 1 DMA (pads to a single (8,128) tile)
    sab_col = jnp.tile(schedules["sqrtab"][ts], C).reshape(CB, 1)         # row c*B+b -> sqrtab[t_b]
    smab_col = jnp.tile(schedules["sqrtmab"][ts], C).reshape(CB, 1)
    bias_col = (b_vec + tw * t_norm[None, :]).reshape(CB, 1)              # row o*B+b -> b[o]+tw[o]*t_norm[b]
    w_cols = jnp.repeat(w, B, axis=0)                                     # (CB, C): row o*B+b -> w[o, :]
    scl = jnp.concatenate([sab_col, smab_col, bias_col, w_cols], axis=1).astype(jnp.float32)

    kernel = functools.partial(ddpm_loss_kernel, B=B, C=C, inv_total=1.0 / (CB * HW))

    cost = pl.CostEstimate(
        flops=(4 + 2 * C + 3) * CB * HW,
        transcendentals=0,
        bytes_accessed=slab.size * 4 + scl.size * 4 + 4,
    )

    loss = pl.pallas_call(
        kernel,
        out_shape=jax.ShapeDtypeStruct((1, 1), jnp.float32),
        # single gridless invocation: whole arrays resident in VMEM, 2 input DMAs total
        in_specs=[pl.BlockSpec(memory_space=pltpu.MemorySpace.VMEM)] * 2,
        out_specs=pl.BlockSpec(memory_space=pltpu.MemorySpace.VMEM),
        cost_estimate=cost,
    )(slab, scl)

    # the trailing slice fuses under the enclosing jit
    return loss[0, 0], ts, noise


# --------------------------- pure-JAX reference -------------------------------
def ddpm_forward_ref(x_nchw, ts, noise, schedules, n_T, w, b_vec, tw):
    B, C, H, W = x_nchw.shape
    sab = schedules["sqrtab"][ts][:, None, None, None]
    smab = schedules["sqrtmab"][ts][:, None, None, None]
    x_t = sab * x_nchw + smab * noise
    t_norm = ts.astype(jnp.float32) / n_T
    x_flat = x_t.reshape(B, C, H * W)
    eps = (jnp.einsum("oc,bcp->bop", w, x_flat)
           + b_vec[None]
           + tw[None] * t_norm[:, None, None])
    return jnp.mean((noise.reshape(B, C, H * W) - eps) ** 2)


# ----------------------------------- main --------------------------------------
if __name__ == "__main__":
    key = jax.random.PRNGKey(0)
    k_x, k_w, k_b, k_tw, k_fwd = jax.random.split(key, 5)

    B, C, H, W = 2, 4, 16, 16
    n_T = 100
    betas = (1e-4, 0.02)

    x = jax.random.normal(k_x, (B, C, H, W), dtype=jnp.float32)

    # deterministic surrogate nn_model params (per-pixel linear + time embedding)
    w_mat = jax.random.normal(k_w, (C, C), dtype=jnp.float32) * 0.1
    b_vec = jax.random.normal(k_b, (C, 1), dtype=jnp.float32) * 0.05
    tw = jax.random.normal(k_tw, (C, 1), dtype=jnp.float32) * 0.05

    scheds = ddpm_schedules(betas[0], betas[1], n_T)

    loss, ts, noise = ddpm_forward(x, k_fwd, scheds, n_T=n_T, w=w_mat, b_vec=b_vec, tw=tw)
    loss = jax.block_until_ready(loss)

    loss_ref = ddpm_forward_ref(x, ts, noise, scheds, n_T, w_mat, b_vec, tw)
    np.testing.assert_allclose(np.asarray(loss), np.asarray(loss_ref),
                               rtol=1e-4, atol=1e-6)

    print("KERNEL_OK")
</pallas_src>

<mosaic_0001>
module attributes {stable_mosaic.version = 11 : i64} {
  func.func @ddpm_loss_kernel(%arg0: memref<16x256xf32, #tpu.memory_space<vmem>>, %arg1: memref<8x7xf32, #tpu.memory_space<vmem>>, %arg2: memref<1x1xf32, #tpu.memory_space<vmem>>) attributes {dimension_semantics = [], scalar_prefetch = 0 : i64, scratch_operands = 0 : i64, tpu.core_type = #tpu.core_type<tc>} {
    %c0 = arith.constant 0 : index
    %c0_0 = arith.constant 0 : index
    %0 = vector.load %arg0[%c0, %c0_0] : memref<16x256xf32, #tpu.memory_space<vmem>>, vector<8x256xf32>
    %c8 = arith.constant 8 : index
    %c0_1 = arith.constant 0 : index
    %1 = vector.load %arg0[%c8, %c0_1] : memref<16x256xf32, #tpu.memory_space<vmem>>, vector<8x256xf32>
    %c0_2 = arith.constant 0 : index
    %c0_3 = arith.constant 0 : index
    %2 = vector.load %arg1[%c0_2, %c0_3] : memref<8x7xf32, #tpu.memory_space<vmem>>, vector<8x1xf32>
    %3 = vector.broadcast %2 : vector<8x1xf32> to vector<8x256xf32>
    %4 = arith.mulf %3, %0 : vector<8x256xf32>
    %c0_4 = arith.constant 0 : index
    %c1 = arith.constant 1 : index
    %5 = vector.load %arg1[%c0_4, %c1] : memref<8x7xf32, #tpu.memory_space<vmem>>, vector<8x1xf32>
    %6 = vector.broadcast %5 : vector<8x1xf32> to vector<8x256xf32>
    %7 = arith.mulf %6, %1 : vector<8x256xf32>
    %8 = arith.addf %4, %7 : vector<8x256xf32>
    %cst = arith.constant 0.000000e+00 : f32
    %9 = vector.broadcast %cst : f32 to vector<1x1xf32>
    %c0_5 = arith.constant 0 : index
    %c2 = arith.constant 2 : index
    %10 = vector.load %arg1[%c0_5, %c2] : memref<8x7xf32, #tpu.memory_space<vmem>>, vector<2x1xf32>
    %c0_6 = arith.constant 0 : index
    %c3 = arith.constant 3 : index
    %11 = vector.load %arg1[%c0_6, %c3] : memref<8x7xf32, #tpu.memory_space<vmem>>, vector<2x1xf32>
    %12 = vector.extract_strided_slice %8 {offsets = [0, 0], sizes = [2, 256], strides = [1, 1]} : vector<8x256xf32> to vector<2x256xf32>
    %13 = vector.broadcast %11 : vector<2x1xf32> to vector<2x256xf32>
    %14 = arith.mulf %13, %12 : vector<2x256xf32>
    %15 = vector.broadcast %10 : vector<2x1xf32> to vector<2x256xf32>
    %16 = arith.addf %15, %14 : vector<2x256xf32>
    %c0_7 = arith.constant 0 : index
    %c4 = arith.constant 4 : index
    %17 = vector.load %arg1[%c0_7, %c4] : memref<8x7xf32, #tpu.memory_space<vmem>>, vector<2x1xf32>
    %18 = vector.extract_strided_slice %8 {offsets = [2, 0], sizes = [2, 256], strides = [1, 1]} : vector<8x256xf32> to vector<2x256xf32>
    %19 = vector.broadcast %17 : vector<2x1xf32> to vector<2x256xf32>
    %20 = arith.mulf %19, %18 : vector<2x256xf32>
    %21 = arith.addf %16, %20 : vector<2x256xf32>
    %c0_8 = arith.constant 0 : index
    %c5 = arith.constant 5 : index
    %22 = vector.load %arg1[%c0_8, %c5] : memref<8x7xf32, #tpu.memory_space<vmem>>, vector<2x1xf32>
    %23 = vector.extract_strided_slice %8 {offsets = [4, 0], sizes = [2, 256], strides = [1, 1]} : vector<8x256xf32> to vector<2x256xf32>
    %24 = vector.broadcast %22 : vector<2x1xf32> to vector<2x256xf32>
    %25 = arith.mulf %24, %23 : vector<2x256xf32>
    %26 = arith.addf %21, %25 : vector<2x256xf32>
    %c0_9 = arith.constant 0 : index
    %c6 = arith.constant 6 : index
    %27 = vector.load %arg1[%c0_9, %c6] : memref<8x7xf32, #tpu.memory_space<vmem>>, vector<2x1xf32>
    %28 = vector.extract_strided_slice %8 {offsets = [6, 0], sizes = [2, 256], strides = [1, 1]} : vector<8x256xf32> to vector<2x256xf32>
    %29 = vector.broadcast %27 : vector<2x1xf32> to vector<2x256xf32>
    %30 = arith.mulf %29, %28 : vector<2x256xf32>
    %31 = arith.addf %26, %30 : vector<2x256xf32>
    %32 = vector.extract_strided_slice %1 {offsets = [0, 0], sizes = [2, 256], strides = [1, 1]} : vector<8x256xf32> to vector<2x256xf32>
    %33 = arith.subf %32, %31 : vector<2x256xf32>
    %34 = arith.mulf %33, %33 : vector<2x256xf32>
    %cst_10 = arith.constant dense<0.000000e+00> : vector<2xf32>
    %35 = vector.multi_reduction <add>, %34, %cst_10 [1] : vector<2x256xf32> to vector<2xf32>
    %36 = vector.shape_cast %35 : vector<2xf32> to vector<2x1xf32>
    %cst_11 = arith.constant dense<0.000000e+00> : vector<1xf32>
    %37 = vector.multi_reduction <add>, %36, %cst_11 [0] : vector<2x1xf32> to vector<1xf32>
    %38 = vector.shape_cast %37 : vector<1xf32> to vector<1x1xf32>
    %39 = arith.addf %9, %38 : vector<1x1xf32>
    %c2_12 = arith.constant 2 : index
    %c2_13 = arith.constant 2 : index
    %40 = vector.load %arg1[%c2_12, %c2_13] : memref<8x7xf32, #tpu.memory_space<vmem>>, vector<2x1xf32>
    %c2_14 = arith.constant 2 : index
    %c3_15 = arith.constant 3 : index
    %41 = vector.load %arg1[%c2_14, %c3_15] : memref<8x7xf32, #tpu.memory_space<vmem>>, vector<2x1xf32>
    %42 = vector.extract_strided_slice %8 {offsets = [0, 0], sizes = [2, 256], strides = [1, 1]} : vector<8x256xf32> to vector<2x256xf32>
    %43 = vector.broadcast %41 : vector<2x1xf32> to vector<2x256xf32>
    %44 = arith.mulf %43, %42 : vector<2x256xf32>
    %45 = vector.broadcast %40 : vector<2x1xf32> to vector<2x256xf32>
    %46 = arith.addf %45, %44 : vector<2x256xf32>
    %c2_16 = arith.constant 2 : index
    %c4_17 = arith.constant 4 : index
    %47 = vector.load %arg1[%c2_16, %c4_17] : memref<8x7xf32, #tpu.memory_space<vmem>>, vector<2x1xf32>
    %48 = vector.extract_strided_slice %8 {offsets = [2, 0], sizes = [2, 256], strides = [1, 1]} : vector<8x256xf32> to vector<2x256xf32>
    %49 = vector.broadcast %47 : vector<2x1xf32> to vector<2x256xf32>
    %50 = arith.mulf %49, %48 : vector<2x256xf32>
    %51 = arith.addf %46, %50 : vector<2x256xf32>
    %c2_18 = arith.constant 2 : index
    %c5_19 = arith.constant 5 : index
    %52 = vector.load %arg1[%c2_18, %c5_19] : memref<8x7xf32, #tpu.memory_space<vmem>>, vector<2x1xf32>
    %53 = vector.extract_strided_slice %8 {offsets = [4, 0], sizes = [2, 256], strides = [1, 1]} : vector<8x256xf32> to vector<2x256xf32>
    %54 = vector.broadcast %52 : vector<2x1xf32> to vector<2x256xf32>
    %55 = arith.mulf %54, %53 : vector<2x256xf32>
    %56 = arith.addf %51, %55 : vector<2x256xf32>
    %c2_20 = arith.constant 2 : index
    %c6_21 = arith.constant 6 : index
    %57 = vector.load %arg1[%c2_20, %c6_21] : memref<8x7xf32, #tpu.memory_space<vmem>>, vector<2x1xf32>
    %58 = vector.extract_strided_slice %8 {offsets = [6, 0], sizes = [2, 256], strides = [1, 1]} : vector<8x256xf32> to vector<2x256xf32>
    %59 = vector.broadcast %57 : vector<2x1xf32> to vector<2x256xf32>
    %60 = arith.mulf %59, %58 : vector<2x256xf32>
    %61 = arith.addf %56, %60 : vector<2x256xf32>
    %62 = vector.extract_strided_slice %1 {offsets = [2, 0], sizes = [2, 256], strides = [1, 1]} : vector<8x256xf32> to vector<2x256xf32>
    %63 = arith.subf %62, %61 : vector<2x256xf32>
    %64 = arith.mulf %63, %63 : vector<2x256xf32>
    %cst_22 = arith.constant dense<0.000000e+00> : vector<2xf32>
    %65 = vector.multi_reduction <add>, %64, %cst_22 [1] : vector<2x256xf32> to vector<2xf32>
    %66 = vector.shape_cast %65 : vector<2xf32> to vector<2x1xf32>
    %cst_23 = arith.constant dense<0.000000e+00> : vector<1xf32>
    %67 = vector.multi_reduction <add>, %66, %cst_23 [0] : vector<2x1xf32> to vector<1xf32>
    %68 = vector.shape_cast %67 : vector<1xf32> to vector<1x1xf32>
    %69 = arith.addf %39, %68 : vector<1x1xf32>
    %c4_24 = arith.constant 4 : index
    %c2_25 = arith.constant 2 : index
    %70 = vector.load %arg1[%c4_24, %c2_25] : memref<8x7xf32, #tpu.memory_space<vmem>>, vector<2x1xf32>
    %c4_26 = arith.constant 4 : index
    %c3_27 = arith.constant 3 : index
    %71 = vector.load %arg1[%c4_26, %c3_27] : memref<8x7xf32, #tpu.memory_space<vmem>>, vector<2x1xf32>
    %72 = vector.extract_strided_slice %8 {offsets = [0, 0], sizes = [2, 256], strides = [1, 1]} : vector<8x256xf32> to vector<2x256xf32>
    %73 = vector.broadcast %71 : vector<2x1xf32> to vector<2x256xf32>
    %74 = arith.mulf %73, %72 : vector<2x256xf32>
    %75 = vector.broadcast %70 : vector<2x1xf32> to vector<2x256xf32>
    %76 = arith.addf %75, %74 : vector<2x256xf32>
    %c4_28 = arith.constant 4 : index
    %c4_29 = arith.constant 4 : index
    %77 = vector.load %arg1[%c4_28, %c4_29] : memref<8x7xf32, #tpu.memory_space<vmem>>, vector<2x1xf32>
    %78 = vector.extract_strided_slice %8 {offsets = [2, 0], sizes = [2, 256], strides = [1, 1]} : vector<8x256xf32> to vector<2x256xf32>
    %79 = vector.broadcast %77 : vector<2x1xf32> to vector<2x256xf32>
    %80 = arith.mulf %79, %78 : vector<2x256xf32>
    %81 = arith.addf %76, %80 : vector<2x256xf32>
    %c4_30 = arith.constant 4 : index
    %c5_31 = arith.constant 5 : index
    %82 = vector.load %arg1[%c4_30, %c5_31] : memref<8x7xf32, #tpu.memory_space<vmem>>, vector<2x1xf32>
    %83 = vector.extract_strided_slice %8 {offsets = [4, 0], sizes = [2, 256], strides = [1, 1]} : vector<8x256xf32> to vector<2x256xf32>
    %84 = vector.broadcast %82 : vector<2x1xf32> to vector<2x256xf32>
    %85 = arith.mulf %84, %83 : vector<2x256xf32>
    %86 = arith.addf %81, %85 : vector<2x256xf32>
    %c4_32 = arith.constant 4 : index
    %c6_33 = arith.constant 6 : index
    %87 = vector.load %arg1[%c4_32, %c6_33] : memref<8x7xf32, #tpu.memory_space<vmem>>, vector<2x1xf32>
    %88 = vector.extract_strided_slice %8 {offsets = [6, 0], sizes = [2, 256], strides = [1, 1]} : vector<8x256xf32> to vector<2x256xf32>
    %89 = vector.broadcast %87 : vector<2x1xf32> to vector<2x256xf32>
    %90 = arith.mulf %89, %88 : vector<2x256xf32>
    %91 = arith.addf %86, %90 : vector<2x256xf32>
    %92 = vector.extract_strided_slice %1 {offsets = [4, 0], sizes = [2, 256], strides = [1, 1]} : vector<8x256xf32> to vector<2x256xf32>
    %93 = arith.subf %92, %91 : vector<2x256xf32>
    %94 = arith.mulf %93, %93 : vector<2x256xf32>
    %cst_34 = arith.constant dense<0.000000e+00> : vector<2xf32>
    %95 = vector.multi_reduction <add>, %94, %cst_34 [1] : vector<2x256xf32> to vector<2xf32>
    %96 = vector.shape_cast %95 : vector<2xf32> to vector<2x1xf32>
    %cst_35 = arith.constant dense<0.000000e+00> : vector<1xf32>
    %97 = vector.multi_reduction <add>, %96, %cst_35 [0] : vector<2x1xf32> to vector<1xf32>
    %98 = vector.shape_cast %97 : vector<1xf32> to vector<1x1xf32>
    %99 = arith.addf %69, %98 : vector<1x1xf32>
    %c6_36 = arith.constant 6 : index
    %c2_37 = arith.constant 2 : index
    %100 = vector.load %arg1[%c6_36, %c2_37] : memref<8x7xf32, #tpu.memory_space<vmem>>, vector<2x1xf32>
    %c6_38 = arith.constant 6 : index
    %c3_39 = arith.constant 3 : index
    %101 = vector.load %arg1[%c6_38, %c3_39] : memref<8x7xf32, #tpu.memory_space<vmem>>, vector<2x1xf32>
    %102 = vector.extract_strided_slice %8 {offsets = [0, 0], sizes = [2, 256], strides = [1, 1]} : vector<8x256xf32> to vector<2x256xf32>
    %103 = vector.broadcast %101 : vector<2x1xf32> to vector<2x256xf32>
    %104 = arith.mulf %103, %102 : vector<2x256xf32>
    %105 = vector.broadcast %100 : vector<2x1xf32> to vector<2x256xf32>
    %106 = arith.addf %105, %104 : vector<2x256xf32>
    %c6_40 = arith.constant 6 : index
    %c4_41 = arith.constant 4 : index
    %107 = vector.load %arg1[%c6_40, %c4_41] : memref<8x7xf32, #tpu.memory_space<vmem>>, vector<2x1xf32>
    %108 = vector.extract_strided_slice %8 {offsets = [2, 0], sizes = [2, 256], strides = [1, 1]} : vector<8x256xf32> to vector<2x256xf32>
    %109 = vector.broadcast %107 : vector<2x1xf32> to vector<2x256xf32>
    %110 = arith.mulf %109, %108 : vector<2x256xf32>
    %111 = arith.addf %106, %110 : vector<2x256xf32>
    %c6_42 = arith.constant 6 : index
    %c5_43 = arith.constant 5 : index
    %112 = vector.load %arg1[%c6_42, %c5_43] : memref<8x7xf32, #tpu.memory_space<vmem>>, vector<2x1xf32>
    %113 = vector.extract_strided_slice %8 {offsets = [4, 0], sizes = [2, 256], strides = [1, 1]} : vector<8x256xf32> to vector<2x256xf32>
    %114 = vector.broadcast %112 : vector<2x1xf32> to vector<2x256xf32>
    %115 = arith.mulf %114, %113 : vector<2x256xf32>
    %116 = arith.addf %111, %115 : vector<2x256xf32>
    %c6_44 = arith.constant 6 : index
    %c6_45 = arith.constant 6 : index
    %117 = vector.load %arg1[%c6_44, %c6_45] : memref<8x7xf32, #tpu.memory_space<vmem>>, vector<2x1xf32>
    %118 = vector.extract_strided_slice %8 {offsets = [6, 0], sizes = [2, 256], strides = [1, 1]} : vector<8x256xf32> to vector<2x256xf32>
    %119 = vector.broadcast %117 : vector<2x1xf32> to vector<2x256xf32>
    %120 = arith.mulf %119, %118 : vector<2x256xf32>
    %121 = arith.addf %116, %120 : vector<2x256xf32>
    %122 = vector.extract_strided_slice %1 {offsets = [6, 0], sizes = [2, 256], strides = [1, 1]} : vector<8x256xf32> to vector<2x256xf32>
    %123 = arith.subf %122, %121 : vector<2x256xf32>
    %124 = arith.mulf %123, %123 : vector<2x256xf32>
    %cst_46 = arith.constant dense<0.000000e+00> : vector<2xf32>
    %125 = vector.multi_reduction <add>, %124, %cst_46 [1] : vector<2x256xf32> to vector<2xf32>
    %126 = vector.shape_cast %125 : vector<2xf32> to vector<2x1xf32>
    %cst_47 = arith.constant dense<0.000000e+00> : vector<1xf32>
    %127 = vector.multi_reduction <add>, %126, %cst_47 [0] : vector<2x1xf32> to vector<1xf32>
    %128 = vector.shape_cast %127 : vector<1xf32> to vector<1x1xf32>
    %129 = arith.addf %99, %128 : vector<1x1xf32>
    %cst_48 = arith.constant 4.8828125E-4 : f32
    %130 = vector.broadcast %cst_48 : f32 to vector<1x1xf32>
    %131 = arith.mulf %129, %130 : vector<1x1xf32>
    %c0_49 = arith.constant 0 : index
    %c0_50 = arith.constant 0 : index
    %132 = vector.load %arg2[%c0_49, %c0_50] : memref<1x1xf32, #tpu.memory_space<vmem>>, vector<1x1xf32>
    tpu.vector_store %arg2[%c0_49, %c0_50], %131 {strides = array<i32>} : memref<1x1xf32, #tpu.memory_space<vmem>>, vector<1x1xf32>,
    return
  }
}

</mosaic_0001>

<llo_original>
// kernel: tile.18
$region0: #{tile.18}
  #allocation0 [shape = 's32[1]{0}', space=sflag, size = 0x4, scoped, tag = 'scoped memory for tile.18']
  %s0 = inlined_call_operand.vmem [shape: f32[2], index: 0, kind: input, shape index: {}]
  %s1 = inlined_call_operand.vmem [shape: f32[4,2], index: 1, kind: output, shape index: {}]
  // Predicated region
  $region2: #{tile.18} parent=0 // pred_check
    _
  $region3: #{tile.18} parent=0 // pred_check_branch
    %3 = sbr.rel (0) target = $region5
  $region4: #{tile.18} parent=0 // pred_region
    _
  $region5: #{tile.18} parent=0 // pred_fallthru
    _
  %v4 = vld [vmem:[%s0] ss:$0 sm:$0xff]
  %5 = vst [vmem:[%s1] sm:$0xf] %v4

// kernel: ddpm_forward.21
$region0: #{ddpm_forward.21}
  #allocation0 [shape = 'u32[]', space=smem, size = 0x4, offset = 0x4, fixed_abs, tag = 'smem constant byte address 0x4 - core index']
  #allocation1 [shape = 'u32[144,128]{1,0:T(1,128)}', space=vmem, size = 0x12000, scoped, tag = 'internal scratch']
  %s0 = inlined_call_operand.vmem [shape: f32[16,256], index: 0, kind: input, shape index: {}]
  %s1 = inlined_call_operand.vmem [shape: f32[8,7], index: 1, kind: input, shape index: {}]
  %s2 = inlined_call_operand.hbm [shape: f32[1,1], index: 2, kind: output, shape index: {}]
  %s3 = sld [smem:[#allocation0]]
  $region18: #{ddpm_forward.21} parent=0
    _
  %s5 = ssub.s32 1, %s3
  %s6 = scalar_select 0, %s5, %s3
  $region1: #{ddpm_forward.21} parent=0
    #allocation2 [shape = 'u8[512]{0}', space=vmem, size = 0x400, scoped, tag = 'output window, operand 0, single buffered']
    #allocation3 [shape = 's32[1]{0}', space=sflag, size = 0x4, scoped, tag = 'scoped memory for ddpm_forward.21']
    %7 = vsyncpa [#allocation3], 0
    // Predicated region
    $region2: #{ddpm_forward.21} parent=1 // pred_check
      _
    $region3: #{ddpm_forward.21} parent=1 // pred_check_branch
      %9 = sbr.rel (0) target = $region5
    $region4: #{ddpm_forward.21} parent=1 // pred_region
      _
    $region5: #{ddpm_forward.21} parent=1 // pred_fallthru
      _
    // Predicated region
    $region6: #{ddpm_forward.21} parent=1 // pred_check
      _
    $region7: #{ddpm_forward.21} parent=1 // pred_check_branch
      %11 = sbr.rel (0) target = $region9
    $region8: #{ddpm_forward.21} parent=1 // pred_region
      _
    $region9: #{ddpm_forward.21} parent=1 // pred_fallthru
      _
    %v12 = vld [vmem:[%s0] sm:$0xff]
    %v13 = vld [vmem:[%s0 + $0x8] sm:$0xff]
    %v14 = vld [vmem:[%s0 + $0x10] sm:$0xff]
    %v15 = vld [vmem:[%s0 + $0x18] sm:$0xff]
    %v16 = vld [vmem:[%s1] sm:$0xff]
    %18 = vset.pattern.permute.xlu0 0
    %19 = vperm.xlu0 %18, %v16
    %v20 = vpop.permute.xlu0 %19
    %v22 = vmul.f32 %v20, %v12
    %v23 = vmul.f32 %v20, %v13
    %24 = vset.pattern.permute.xlu0 1
    %25 = vperm.xlu0 %24, %v16
    %v26 = vpop.permute.xlu0 %25
    %v28 = vmul.f32 %v26, %v14
    %v29 = vmul.f32 %v26, %v15
    %v30 = vadd.f32 %v22, %v28
    %v31 = vadd.f32 %v23, %v29
    %v32 = vld [vmem:[%s1] sm:$0x3]
    %34 = vset.pattern.permute.xlu0 3
    %35 = vperm.xlu0 %34, %v32
    %v36 = vpop.permute.xlu0 %35
    %v38 = vmul.f32 %v36, %v30
    %v39 = vmul.f32 %v36, %v31
    %40 = vset.pattern.permute.xlu0 2
    %41 = vperm.xlu0 %40, %v32
    %v42 = vpop.permute.xlu0 %41
    %v44 = vadd.f32 %v42, %v38
    %v45 = vadd.f32 %v42, %v39
    %46 = vset.pattern.permute.xlu0 4
    %47 = vperm.xlu0 %46, %v32
    %v48 = vpop.permute.xlu0 %47
    %v52 = vrot.slane %v30, 2
    %v53 = vrot.slane %v31, 2
    %v56 = vmul.f32 %v48, %v52
    %v57 = vmul.f32 %v48, %v53
    %v58 = vadd.f32 %v44, %v56
    %v59 = vadd.f32 %v45, %v57
    %60 = vset.pattern.permute.xlu0 5
    %61 = vperm.xlu0 %60, %v32
    %v62 = vpop.permute.xlu0 %61
    %v64 = vrot.slane %v30, 4
    %v65 = vrot.slane %v31, 4
    %v68 = vmul.f32 %v62, %v64
    %v69 = vmul.f32 %v62, %v65
    %v70 = vadd.f32 %v58, %v68
    %v71 = vadd.f32 %v59, %v69
    %72 = vset.pattern.permute.xlu0 6
    %73 = vperm.xlu0 %72, %v32
    %v74 = vpop.permute.xlu0 %73
    %v76 = vrot.slane %v30, 6
    %v77 = vrot.slane %v31, 6
    %v80 = vmul.f32 %v74, %v76
    %v81 = vmul.f32 %v74, %v77
    %v82 = vadd.f32 %v70, %v80
    %v83 = vadd.f32 %v71, %v81
    %v84 = vsub.f32 %v14, %v82
    %v85 = vsub.f32 %v15, %v83
    %v86 = vmul.f32 %v84, %v84
    %v87 = vmul.f32 %v85, %v85
    %vm88 = vcmask 1041408
    %v89 = vsel %vm88, %v86, 0.0
    %v90 = vsel %vm88, %v87, 0.0
    %v91 = vadd.f32 %v89, %v90
    %92 = vadd.xlane.f32.xlu0 %v91
    %v93 = vpop.xlane.xlu0 %92
    %v94 = vsel %vm88, %v93, 0.0
    %v95 = vrot.slane %v94, 4
    %v96 = vadd.f32 %v94, %v95
    %v97 = vrot.slane %v96, 2
    %v98 = vadd.f32 %v96, %v97
    %v99 = vrot.slane %v98, 1
    %v100 = vadd.f32 %v98, %v99
    %v101 = vadd.f32 %v100, 0.0
    %v102 = vld [vmem:[%s1 + $0x2] sm:$0x3]
    %104 = vset.pattern.permute.xlu0 3
    %105 = vperm.xlu0 %104, %v102
    %v106 = vpop.permute.xlu0 %105
    %v108 = vmul.f32 %v106, %v30
    %v109 = vmul.f32 %v106, %v31
    %110 = vset.pattern.permute.xlu0 2
    %111 = vperm.xlu0 %110, %v102
    %v112 = vpop.permute.xlu0 %111
    %v114 = vadd.f32 %v112, %v108
    %v115 = vadd.f32 %v112, %v109
    %116 = vset.pattern.permute.xlu0 4
    %117 = vperm.xlu0 %116, %v102
    %v118 = vpop.permute.xlu0 %117
    %v120 = vmul.f32 %v118, %v52
    %v121 = vmul.f32 %v118, %v53
    %v122 = vadd.f32 %v114, %v120
    %v123 = vadd.f32 %v115, %v121
    %124 = vset.pattern.permute.xlu0 5
    %125 = vperm.xlu0 %124, %v102
    %v126 = vpop.permute.xlu0 %125
    %v128 = vmul.f32 %v126, %v64
    %v129 = vmul.f32 %v126, %v65
    %v130 = vadd.f32 %v122, %v128
    %v131 = vadd.f32 %v123, %v129
    %132 = vset.pattern.permute.xlu0 6
    %133 = vperm.xlu0 %132, %v102
    %v134 = vpop.permute.xlu0 %133
    %v136 = vmul.f32 %v134, %v76
    %v137 = vmul.f32 %v134, %v77
    %v138 = vadd.f32 %v130, %v136
    %v139 = vadd.f32 %v131, %v137
    %v142 = vrot.slane %v138, 6
    %v143 = vrot.slane %v139, 6
    %v146 = vsub.f32 %v14, %v142
    %v147 = vsub.f32 %v15, %v143
    %v148 = vmul.f32 %v146, %v146
    %v149 = vmul.f32 %v147, %v147
    %vm150 = vcmask 1043458
    %v151 = vsel %vm150, %v148, 0.0
    %v152 = vsel %vm150, %v149, 0.0
    %v153 = vadd.f32 %v151, %v152
    %154 = vadd.xlane.f32.xlu0 %v153
    %v155 = vpop.xlane.xlu0 %154
    %v157 = vrot.slane %v155, 2
    %v159 = vsel %vm88, %v157, 0.0
    %v160 = vrot.slane %v159, 4
    %v161 = vadd.f32 %v159, %v160
    %v162 = vrot.slane %v161, 2
    %v163 = vadd.f32 %v161, %v162
    %v164 = vrot.slane %v163, 1
    %v165 = vadd.f32 %v163, %v164
    %v166 = vadd.f32 %v101, %v165
    %v167 = vld [vmem:[%s1 + $0x4] sm:$0x3]
    %169 = vset.pattern.permute.xlu0 3
    %170 = vperm.xlu0 %169, %v167
    %v171 = vpop.permute.xlu0 %170
    %v173 = vmul.f32 %v171, %v30
    %v174 = vmul.f32 %v171, %v31
    %175 = vset.pattern.permute.xlu0 2
    %176 = vperm.xlu0 %175, %v167
    %v177 = vpop.permute.xlu0 %176
    %v179 = vadd.f32 %v177, %v173
    %v180 = vadd.f32 %v177, %v174
    %181 = vset.pattern.permute.xlu0 4
    %182 = vperm.xlu0 %181, %v167
    %v183 = vpop.permute.xlu0 %182
    %v185 = vmul.f32 %v183, %v52
    %v186 = vmul.f32 %v183, %v53
    %v187 = vadd.f32 %v179, %v185
    %v188 = vadd.f32 %v180, %v186
    %189 = vset.pattern.permute.xlu0 5
    %190 = vperm.xlu0 %189, %v167
    %v191 = vpop.permute.xlu0 %190
    %v193 = vmul.f32 %v191, %v64
    %v194 = vmul.f32 %v191, %v65
    %v195 = vadd.f32 %v187, %v193
    %v196 = vadd.f32 %v188, %v194
    %197 = vset.pattern.permute.xlu0 6
    %198 = vperm.xlu0 %197, %v167
    %v199 = vpop.permute.xlu0 %198
    %v201 = vmul.f32 %v199, %v76
    %v202 = vmul.f32 %v199, %v77
    %v203 = vadd.f32 %v195, %v201
    %v204 = vadd.f32 %v196, %v202
    %v207 = vrot.slane %v203, 4
    %v208 = vrot.slane %v204, 4
    %v211 = vsub.f32 %v14, %v207
    %v212 = vsub.f32 %v15, %v208
    %v213 = vmul.f32 %v211, %v211
    %v214 = vmul.f32 %v212, %v212
    %vm215 = vcmask 1045508
    %v216 = vsel %vm215, %v213, 0.0
    %v217 = vsel %vm215, %v214, 0.0
    %v218 = vadd.f32 %v216, %v217
    %219 = vadd.xlane.f32.xlu0 %v218
    %v220 = vpop.xlane.xlu0 %219
    %v222 = vrot.slane %v220, 4
    %v224 = vsel %vm88, %v222, 0.0
    %v225 = vrot.slane %v224, 4
    %v226 = vadd.f32 %v224, %v225
    %v227 = vrot.slane %v226, 2
    %v228 = vadd.f32 %v226, %v227
    %v229 = vrot.slane %v228, 1
    %v230 = vadd.f32 %v228, %v229
    %v231 = vadd.f32 %v166, %v230
    %v232 = vld [vmem:[%s1 + $0x6] sm:$0x3]
    %234 = vset.pattern.permute.xlu0 3
    %235 = vperm.xlu0 %234, %v232
    %v236 = vpop.permute.xlu0 %235
    %v238 = vmul.f32 %v236, %v30
    %v239 = vmul.f32 %v236, %v31
    %240 = vset.pattern.permute.xlu0 2
    %241 = vperm.xlu0 %240, %v232
    %v242 = vpop.permute.xlu0 %241
    %v244 = vadd.f32 %v242, %v238
    %v245 = vadd.f32 %v242, %v239
    %246 = vset.pattern.permute.xlu0 4
    %247 = vperm.xlu0 %246, %v232
    %v248 = vpop.permute.xlu0 %247
    %v250 = vmul.f32 %v248, %v52
    %v251 = vmul.f32 %v248, %v53
    %v252 = vadd.f32 %v244, %v250
    %v253 = vadd.f32 %v245, %v251
    %254 = vset.pattern.permute.xlu0 5
    %255 = vperm.xlu0 %254, %v232
    %v256 = vpop.permute.xlu0 %255
    %v258 = vmul.f32 %v256, %v64
    %v259 = vmul.f32 %v256, %v65
    %v260 = vadd.f32 %v252, %v258
    %v261 = vadd.f32 %v253, %v259
    %262 = vset.pattern.permute.xlu0 6
    %263 = vperm.xlu0 %262, %v232
    %v264 = vpop.permute.xlu0 %263
    %v266 = vmul.f32 %v264, %v76
    %v267 = vmul.f32 %v264, %v77
    %v268 = vadd.f32 %v260, %v266
    %v269 = vadd.f32 %v261, %v267
    %v272 = vrot.slane %v268, 2
    %v273 = vrot.slane %v269, 2
    %v276 = vsub.f32 %v14, %v272
    %v277 = vsub.f32 %v15, %v273
    %v278 = vmul.f32 %v276, %v276
    %v279 = vmul.f32 %v277, %v277
    %vm280 = vcmask 1047558
    %v281 = vsel %vm280, %v278, 0.0
    %v282 = vsel %vm280, %v279, 0.0
    %v283 = vadd.f32 %v281, %v282
    %284 = vadd.xlane.f32.xlu0 %v283
    %v285 = vpop.xlane.xlu0 %284
    %v287 = vrot.slane %v285, 6
    %v289 = vsel %vm88, %v287, 0.0
    %v290 = vrot.slane %v289, 4
    %v291 = vadd.f32 %v289, %v290
    %v292 = vrot.slane %v291, 2
    %v293 = vadd.f32 %v291, %v292
    %v294 = vrot.slane %v293, 1
    %v295 = vadd.f32 %v293, %v294
    %v296 = vadd.f32 %v231, %v295
    %v297 = vmul.f32 %v296, 0.00048828125
    %vm298 = vcmask 0
    %299 = vst.msk [vmem:[#allocation2] sm:$0x1] %vm298, %v297
    // Predicated region
    $region10: #{ddpm_forward.21} parent=1 // pred_check
      _
    $region11: #{ddpm_forward.21} parent=1 // pred_check_branch
      %301 = sbr.rel (0) target = $region13
    $region12: #{ddpm_forward.21} parent=1 // pred_region
      %s303 = ssub.s32 16, 16
      %304 = vsyncadd [#allocation3], %s303
      %s306 = sshll.u32 [#allocation2], 4
      %s307 = int_to_ptr.vmem [resolvable:$true] %s306
      %309 = dma.vmem_to_hbm [thread:$0]  %s307, 16, %s2, [#allocation3]
    $region13: #{ddpm_forward.21} parent=1 // pred_fallthru
      _
    // Predicated region
    $region14: #{ddpm_forward.21} parent=1 // pred_check
      _
    $region15: #{ddpm_forward.21} parent=1 // pred_check_branch
      %311 = sbr.rel (0) target = $region17
    $region16: #{ddpm_forward.21} parent=1 // pred_region
      %312 = dma.done [#allocation3], 16
    $region17: #{ddpm_forward.21} parent=1 // pred_fallthru
      _
    %313 = vsyncpa [#allocation3], 1

</llo_original>
